<compile_context>
chip_gen: v6e
topology: v6e:2x2x1
jax: 0.10.0
libtpu: 0.0.40
codegen_flags: <defaults>
</compile_context>

<pallas_src>
import jax
import jax.numpy as jnp
from jax.experimental import pallas as pl
from jax.experimental.pallas import tpu as pltpu


def _choose_tiles(B, S, H, itemsize, budget_bytes=24 * 1024 * 1024):
    """Pick (tB, tS) so double-buffered in+out+mask blocks fit the VMEM budget."""
    mask_row = H * itemsize  # mask bytes per seq row (same dtype as x)

    def fits(tB, tS):
        # 2 buffers x (x in-block + x out-block + mask block)
        return 2 * (2 * tB * tS * H * itemsize + tS * mask_row) <= budget_bytes

    tB = B
    # Shrink the batch tile only if even an 8-row seq tile does not fit.
    while tB > 1 and not fits(tB, min(S, 8)):
        tB = max(1, tB // 2)

    if fits(tB, S):
        tS = S  # full seq extent in one block
    else:
        per_row = 2 * (2 * tB * H * itemsize + mask_row)
        tS = max(8, (budget_bytes // per_row) // 8 * 8)  # multiple of 8
        tS = min(tS, S)
    return tB, tS


def _vdrop_kernel(mask_ref, x_ref, o_ref):
    # mask_ref: (tS, H), already scaled by 1/(1-p); shared across the batch dim.
    # Broadcast over the leading batch dim; multiply in the native dtype.
    o_ref[...] = x_ref[...] * mask_ref[...][None, :, :]


def variational_dropout(x, key, p=0.5, training=True, donate_x=False):
    """Pallas TPU implementation of VariationalDropout.forward.

    x:   (B, S, H) array.
    key: jax PRNG key used to sample the (S, H) mask that is broadcast over
         the batch dimension (matches torch's (1, S, H) mask).
    """
    if (not training) or p == 0.0:
        return x

    keep_prob = 1.0 - p
    inv_keep = 1.0 / keep_prob

    B, S, H = x.shape
    itemsize = jnp.dtype(x.dtype).itemsize
    tB, tS = _choose_tiles(B, S, H, itemsize)

    # One mask per (seq, hidden) position, shared across batch (torch: (1,S,H)).
    keep = jax.random.bernoulli(key, keep_prob, (S, H))
    mask = jnp.where(keep, inv_keep, 0.0).astype(x.dtype)

    grid = (pl.cdiv(S, tS), pl.cdiv(B, tB))

    kwargs = {}
    if donate_x:
        kwargs["input_output_aliases"] = {1: 0}  # out aliases x (in-place safe)

    return pl.pallas_call(
        _vdrop_kernel,
        out_shape=jax.ShapeDtypeStruct(x.shape, x.dtype),
        grid=grid,
        in_specs=[
            # mask: depends only on the seq-tile index -> identical block for
            # every batch tile, stays resident across the inner batch loop.
            pl.BlockSpec((tS, H), lambda s, b: (s, 0)),
            pl.BlockSpec((tB, tS, H), lambda s, b: (b, s, 0)),
        ],
        out_specs=pl.BlockSpec((tB, tS, H), lambda s, b: (b, s, 0)),
        compiler_params=pltpu.CompilerParams(
            # seq tiles are independent -> megacore-shardable; batch tiles
            # innermost ("arbitrary") so the mask block is reused.
            dimension_semantics=("parallel", "arbitrary"),
            vmem_limit_bytes=32 * 1024 * 1024,
        ),
        **kwargs,
    )(mask, x)


if __name__ == "__main__":
    key = jax.random.PRNGKey(0)
    key_x, key_mask = jax.random.split(key)

    B, S, H = 2, 8, 128  # (batch, seq, hidden) — small test shape
    x = jax.random.normal(key_x, (B, S, H), dtype=jnp.float32)

    p = 0.5
    out = variational_dropout(x, key_mask, p=p, training=True)
    out = jax.block_until_ready(out)

    # Sanity checks on the semantics:
    #  - every element is either 0 or x / (1 - p)
    #  - the mask is identical across the batch dimension
    keep_prob = 1.0 - p
    ratio = jnp.where(x != 0, out / x, 0.0)
    is_zero = jnp.isclose(ratio, 0.0, atol=1e-5)
    is_scaled = jnp.isclose(ratio, 1.0 / keep_prob, atol=1e-4)
    assert bool(jnp.all(is_zero | is_scaled)), "values not in {0, x/(1-p)}"

    mask0 = out[0] != 0.0
    mask1 = out[1] != 0.0
    assert bool(jnp.all(mask0 == mask1)), "mask not shared across batch dim"

    # eval mode / p == 0 passthrough
    out_eval = jax.block_until_ready(
        variational_dropout(x, key_mask, p=p, training=False)
    )
    assert bool(jnp.all(out_eval == x))
    out_p0 = jax.block_until_ready(
        variational_dropout(x, key_mask, p=0.0, training=True)
    )
    assert bool(jnp.all(out_p0 == x))

    print("KERNEL_OK")
</pallas_src>

<mosaic_0001>
module attributes {stable_mosaic.version = 11 : i64} {
  func.func @_vdrop_kernel(%arg0: i32, %arg1: i32, %arg2: memref<8x128xf32, #tpu.memory_space<vmem>>, %arg3: memref<2x8x128xf32, #tpu.memory_space<vmem>>, %arg4: memref<2x8x128xf32, #tpu.memory_space<vmem>>) attributes {dimension_semantics = [#tpu.dimension_semantics<parallel>, #tpu.dimension_semantics<arbitrary>], iteration_bounds = array<i64: 1, 1>, scalar_prefetch = 0 : i64, scratch_operands = 0 : i64, tpu.core_type = #tpu.core_type<tc>, window_params = [{transform_indices = @transform_0, window_bounds = array<i64: 8, 128>}, {transform_indices = @transform_1, window_bounds = array<i64: 2, 8, 128>}, {transform_indices = @transform_2, window_bounds = array<i64: 2, 8, 128>}]} {
    %c0 = arith.constant 0 : index
    %c0_0 = arith.constant 0 : index
    %c0_1 = arith.constant 0 : index
    %0 = vector.load %arg3[%c0, %c0_0, %c0_1] : memref<2x8x128xf32, #tpu.memory_space<vmem>>, vector<2x8x128xf32>
    %c0_2 = arith.constant 0 : index
    %c0_3 = arith.constant 0 : index
    %1 = vector.load %arg2[%c0_2, %c0_3] : memref<8x128xf32, #tpu.memory_space<vmem>>, vector<8x128xf32>
    %2 = vector.shape_cast %1 : vector<8x128xf32> to vector<1x8x128xf32>
    %3 = vector.broadcast %2 : vector<1x8x128xf32> to vector<2x8x128xf32>
    %4 = arith.mulf %0, %3 : vector<2x8x128xf32>
    %c0_4 = arith.constant 0 : index
    %c0_5 = arith.constant 0 : index
    %c0_6 = arith.constant 0 : index
    %5 = vector.load %arg4[%c0_4, %c0_5, %c0_6] : memref<2x8x128xf32, #tpu.memory_space<vmem>>, vector<2x8x128xf32>
    tpu.vector_store %arg4[%c0_4, %c0_5, %c0_6], %4 {strides = array<i32>} : memref<2x8x128xf32, #tpu.memory_space<vmem>>, vector<2x8x128xf32>,
    return
  }
  func.func @transform_0(%arg0: i32, %arg1: i32) -> (i32, i32) {
    %c0_i32 = arith.constant 0 : i32
    %c0_i32_0 = arith.constant 0 : i32
    return %arg0, %c0_i32 : i32, i32
  }
  func.func @transform_1(%arg0: i32, %arg1: i32) -> (i32, i32, i32) {
    %c0_i32 = arith.constant 0 : i32
    %c0_i32_0 = arith.constant 0 : i32
    return %arg1, %arg0, %c0_i32 : i32, i32, i32
  }
  func.func @transform_2(%arg0: i32, %arg1: i32) -> (i32, i32, i32) {
    %c0_i32 = arith.constant 0 : i32
    %c0_i32_0 = arith.constant 0 : i32
    return %arg1, %arg0, %c0_i32 : i32, i32, i32
  }
}

</mosaic_0001>

<llo_original>
// kernel: tpu_custom_call.1
$region0: #{tpu_custom_call.1}
  #allocation0 [shape = 'u32[]', space=smem, size = 0x4, offset = 0x4, fixed_abs, tag = 'smem constant byte address 0x4 - core index']
  #allocation1 [shape = 'u32[144,128]{1,0:T(1,128)}', space=vmem, size = 0x12000, scoped, tag = 'internal scratch']
  %s0 = inlined_call_operand.hbm [shape: f32[8,128], index: 0, kind: input, shape index: {}]
  %s1 = inlined_call_operand.hbm [shape: f32[2,8,128], index: 1, kind: input, shape index: {}]
  %s2 = inlined_call_operand.hbm [shape: f32[2,8,128], index: 2, kind: output, shape index: {}]
  %s3 = sld [smem:[#allocation0]]
  $region26: #{tpu_custom_call.1} parent=0
    _
  %s5 = ssub.s32 1, %s3
  %s6 = scalar_select 0, %s5, %s3
  $region1: #{tpu_custom_call.1} parent=0
    #allocation2 [shape = 'u8[4096]{0}', space=vmem, size = 0x1000, scoped, tag = 'input window, operand 0, single buffered']
    #allocation3 [shape = 's32[1]{0}', space=sflag, size = 0x4, scoped, tag = 'scoped memory for tpu_custom_call.1']
    #allocation4 [shape = 's32[1]{0}', space=sflag, size = 0x4, scoped, tag = 'scoped memory for tpu_custom_call.1']
    #allocation5 [shape = 'u8[8192]{0}', space=vmem, size = 0x2000, scoped, tag = 'input window, operand 1, single buffered']
    #allocation6 [shape = 's32[1]{0}', space=sflag, size = 0x4, scoped, tag = 'scoped memory for tpu_custom_call.1']
    #allocation7 [shape = 'u8[8192]{0}', space=vmem, size = 0x2000, scoped, tag = 'output window, operand 0, single buffered']
    %7 = vsyncpa [#allocation3], 0
    %8 = vsyncpa [#allocation6], 0
    %9 = vsyncpa [#allocation4], 0
    // Predicated region
    $region2: #{tpu_custom_call.1} parent=1 // pred_check
      _
    $region3: #{tpu_custom_call.1} parent=1 // pred_check_branch
      %11 = sbr.rel (0) target = $region5
    $region4: #{tpu_custom_call.1} parent=1 // pred_region
      %s13 = ssub.s32 128, 128
      %14 = vsyncadd [#allocation3], %s13
      %s16 = sshll.u32 [#allocation2], 4
      %s17 = int_to_ptr.vmem [resolvable:$true] %s16
      %19 = dma.hbm_to_vmem [thread:$0]  %s0, 128, %s17, [#allocation3]
    $region5: #{tpu_custom_call.1} parent=1 // pred_fallthru
      _
    // Predicated region
    $region6: #{tpu_custom_call.1} parent=1 // pred_check
      _
    $region7: #{tpu_custom_call.1} parent=1 // pred_check_branch
      %21 = sbr.rel (0) target = $region9
    $region8: #{tpu_custom_call.1} parent=1 // pred_region
      %s23 = ssub.s32 256, 256
      %24 = vsyncadd [#allocation6], %s23
      %s25 = sshll.u32 [#allocation5], 4
      %s26 = int_to_ptr.vmem [resolvable:$true] %s25
      %31 = dma.hbm_to_vmem [thread:$0]  %s1, 256, %s26, [#allocation6], 128, 128, 8
    $region9: #{tpu_custom_call.1} parent=1 // pred_fallthru
      _
    // Predicated region
    $region10: #{tpu_custom_call.1} parent=1 // pred_check
      _
    $region11: #{tpu_custom_call.1} parent=1 // pred_check_branch
      %33 = sbr.rel (0) target = $region13
    $region12: #{tpu_custom_call.1} parent=1 // pred_region
      %34 = dma.done [#allocation3], 128
    $region13: #{tpu_custom_call.1} parent=1 // pred_fallthru
      _
    // Predicated region
    $region14: #{tpu_custom_call.1} parent=1 // pred_check
      _
    $region15: #{tpu_custom_call.1} parent=1 // pred_check_branch
      %36 = sbr.rel (0) target = $region17
    $region16: #{tpu_custom_call.1} parent=1 // pred_region
      %37 = dma.done [#allocation6], 256
    $region17: #{tpu_custom_call.1} parent=1 // pred_fallthru
      _
    %v38 = vld [vmem:[#allocation5] sm:$0xff]
    %v39 = vld [vmem:[#allocation5 + $0x8] sm:$0xff]
    %v40 = vld [vmem:[#allocation2] sm:$0xff]
    %v41 = vmul.f32 %v38, %v40
    %v42 = vmul.f32 %v39, %v40
    %43 = vst [vmem:[#allocation7] sm:$0xff] %v41
    %44 = vst [vmem:[#allocation7 + $0x8] sm:$0xff] %v42
    // Predicated region
    $region18: #{tpu_custom_call.1} parent=1 // pred_check
      _
    $region19: #{tpu_custom_call.1} parent=1 // pred_check_branch
      %46 = sbr.rel (0) target = $region21
    $region20: #{tpu_custom_call.1} parent=1 // pred_region
      %s48 = ssub.s32 256, 256
      %49 = vsyncadd [#allocation4], %s48
      %s50 = sshll.u32 [#allocation7], 4
      %s51 = int_to_ptr.vmem [resolvable:$true] %s50
      %56 = dma.vmem_to_hbm [thread:$0]  %s51, 256, %s2, [#allocation4], 128, 128, 8
    $region21: #{tpu_custom_call.1} parent=1 // pred_fallthru
      _
    // Predicated region
    $region22: #{tpu_custom_call.1} parent=1 // pred_check
      _
    $region23: #{tpu_custom_call.1} parent=1 // pred_check_branch
      %58 = sbr.rel (0) target = $region25
    $region24: #{tpu_custom_call.1} parent=1 // pred_region
      %59 = dma.done [#allocation4], 256
    $region25: #{tpu_custom_call.1} parent=1 // pred_fallthru
      _
    %60 = vsyncpa [#allocation3], 1
    %61 = vsyncpa [#allocation6], 1
    %62 = vsyncpa [#allocation4], 1

</llo_original>
